<compile_context>
chip_gen: v5e
topology: v5e:2x2
jax: 0.10.0
libtpu: 0.0.40
codegen_flags: <defaults>
</compile_context>

<pallas_src>
import jax
import jax.numpy as jnp
from jax.experimental import pallas as pl
from jax.experimental.pallas import tpu as pltpu


HEAD_PAD = 256   # 3 * 64 fused head hidden, padded up to a lane multiple
OUT_PAD = 128    # lane-dense output width (results live in lanes 0..2)


def _round_up(x, m):
    return (x + m - 1) // m * m


def expert_driving_kernel(
    x_ref,
    w1_ref, b1_ref,
    w2_ref, b2_ref,
    w3_ref, b3_ref,
    wh1_ref, bh1_ref,
    wh2_ref, bh2_ref,
    out_ref,
):
    bf16 = jnp.bfloat16

    # shared trunk: Linear+ReLU x3 (Dropout = identity at inference).
    # bf16 matmul operands, f32 accumulation; bias add / ReLU in f32.
    x = x_ref[...].astype(bf16)
    h = jnp.dot(x, w1_ref[...], preferred_element_type=jnp.float32) + b1_ref[...]
    h = jnp.maximum(h, 0.0)
    h = jnp.dot(h.astype(bf16), w2_ref[...], preferred_element_type=jnp.float32) + b2_ref[...]
    h = jnp.maximum(h, 0.0)
    f = jnp.dot(h.astype(bf16), w3_ref[...], preferred_element_type=jnp.float32) + b3_ref[...]
    f = jnp.maximum(f, 0.0)

    # fused heads, layer 1: (TILE_B,128) @ (128,256) -> the three 64-wide head
    # hiddens side by side (lanes 192..255 are zero padding -> ReLU(0) = 0).
    hh = jnp.dot(f.astype(bf16), wh1_ref[...], preferred_element_type=jnp.float32) + bh1_ref[...]
    hh = jnp.maximum(hh, 0.0)

    # fused heads, layer 2: block-diagonal (256,128) weight lands
    # accel in lane 0, brake in lane 1, steering in lane 2.
    z = jnp.dot(hh.astype(bf16), wh2_ref[...], preferred_element_type=jnp.float32) + bh2_ref[...]

    # per-lane activation: sigmoid for lanes 0/1 (and padding), tanh for lane 2.
    # tanh(z) = 2*sigmoid(2z) - 1, so a single EUP sigmoid pass suffices.
    col = jax.lax.broadcasted_iota(jnp.int32, z.shape, dimension=1)
    is_tanh = col == 2
    s = jax.nn.sigmoid(jnp.where(is_tanh, 2.0 * z, z))
    out_ref[...] = jnp.where(is_tanh, 2.0 * s - 1.0, s)


def init_params(key, input_size=21, hidden_size=256):
    """Deterministic synthetic parameter init (shapes match the PyTorch module)."""
    half = hidden_size // 2

    def linear(k, fan_in, fan_out):
        kw, kb = jax.random.split(k)
        scale = 1.0 / jnp.sqrt(jnp.float32(fan_in))
        w = jax.random.uniform(kw, (fan_in, fan_out), jnp.float32, -scale, scale)
        b = jax.random.uniform(kb, (1, fan_out), jnp.float32, -scale, scale)
        return w, b

    keys = jax.random.split(key, 9)
    w1, b1 = linear(keys[0], input_size, hidden_size)
    w2, b2 = linear(keys[1], hidden_size, hidden_size)
    w3, b3 = linear(keys[2], hidden_size, half)
    wa1, ba1 = linear(keys[3], half, 64)
    wa2, ba2 = linear(keys[4], 64, 1)
    wb1, bb1 = linear(keys[5], half, 64)
    wb2, bb2 = linear(keys[6], 64, 1)
    ws1, bs1 = linear(keys[7], half, 64)
    ws2, bs2 = linear(keys[8], 64, 1)
    return (w1, b1, w2, b2, w3, b3,
            wa1, ba1, wa2, ba2,
            wb1, bb1, wb2, bb2,
            ws1, bs1, ws2, bs2)


def pack_params(params):
    """One-time wrapper-side packing: pad K, fuse the three heads, cast weights to bf16."""
    (w1, b1, w2, b2, w3, b3,
     wa1, ba1, wa2, ba2,
     wb1, bb1, wb2, bb2,
     ws1, bs1, ws2, bs2) = params

    in_size = w1.shape[0]
    k_pad = max(32, _round_up(in_size, 8))
    w1p = jnp.zeros((k_pad, w1.shape[1]), jnp.float32).at[:in_size, :].set(w1)

    hh = wa1.shape[1]  # 64 hidden units per head
    wh1 = jnp.concatenate([wa1, wb1, ws1], axis=1)                    # (128, 192)
    bh1 = jnp.concatenate([ba1, bb1, bs1], axis=1)                    # (1, 192)
    wh1 = jnp.pad(wh1, ((0, 0), (0, HEAD_PAD - 3 * hh)))              # (128, 256)
    bh1 = jnp.pad(bh1, ((0, 0), (0, HEAD_PAD - 3 * hh)))              # (1, 256)

    # block-diagonal second head layer: col 0 <- accel, col 1 <- brake, col 2 <- steer
    wh2 = jnp.zeros((HEAD_PAD, OUT_PAD), jnp.float32)
    wh2 = wh2.at[0 * hh:1 * hh, 0].set(wa2[:, 0])
    wh2 = wh2.at[1 * hh:2 * hh, 1].set(wb2[:, 0])
    wh2 = wh2.at[2 * hh:3 * hh, 2].set(ws2[:, 0])
    bh2 = jnp.zeros((1, OUT_PAD), jnp.float32)
    bh2 = bh2.at[0, 0].set(ba2[0, 0]).at[0, 1].set(bb2[0, 0]).at[0, 2].set(bs2[0, 0])

    bf = lambda w: w.astype(jnp.bfloat16)
    return (bf(w1p), b1, bf(w2), b2, bf(w3), b3, bf(wh1), bh1, bf(wh2), bh2)


def expert_driving_net(x, packed_params, *, tile_b=256):
    (w1, b1, w2, b2, w3, b3, wh1, bh1, wh2, bh2) = packed_params
    B, in_size = x.shape
    k_pad = w1.shape[0]

    # Batch tile: multiple of 8 sublanes, default 256 rows (MXU-friendly on
    # v6e/v7x, 2x128 on v5e), clamped so tiny batches stay a single tile.
    tb = min(tile_b, _round_up(B, 8))
    b_pad = _round_up(B, tb)

    # zero-pad batch to the tile and features 21 -> k_pad
    xp = jnp.zeros((b_pad, k_pad), jnp.float32).at[:B, :in_size].set(x)

    # weights/biases: full-array blocks with a constant index_map -> fetched
    # once and kept VMEM-resident across grid steps (only x/out are pipelined).
    resident = lambda a: pl.BlockSpec(a.shape, lambda i: (0, 0))

    out = pl.pallas_call(
        expert_driving_kernel,
        out_shape=jax.ShapeDtypeStruct((b_pad, OUT_PAD), jnp.float32),
        grid=(b_pad // tb,),
        in_specs=[pl.BlockSpec((tb, k_pad), lambda i: (i, 0))]
                 + [resident(a) for a in packed_params],
        out_specs=pl.BlockSpec((tb, OUT_PAD), lambda i: (i, 0)),
        compiler_params=pltpu.CompilerParams(
            dimension_semantics=("parallel",),
        ),
    )(xp, *packed_params)

    # torch.cat([accel, brake, steering], dim=1) lives in lanes 0..2
    return out[:B, :3]


def expert_driving_net_ref(x, params):
    """Pure-JAX f32 reference (PyTorch semantics) for correctness check."""
    (w1, b1, w2, b2, w3, b3,
     wa1, ba1, wa2, ba2,
     wb1, bb1, wb2, bb2,
     ws1, bs1, ws2, bs2) = params
    h = jnp.maximum(x @ w1 + b1, 0.0)
    h = jnp.maximum(h @ w2 + b2, 0.0)
    f = jnp.maximum(h @ w3 + b3, 0.0)
    accel = jax.nn.sigmoid(jnp.maximum(f @ wa1 + ba1, 0.0) @ wa2 + ba2)
    brake = jax.nn.sigmoid(jnp.maximum(f @ wb1 + bb1, 0.0) @ wb2 + bb2)
    steer = jnp.tanh(jnp.maximum(f @ ws1 + bs1, 0.0) @ ws2 + bs2)
    return jnp.concatenate([accel, brake, steer], axis=1)


if __name__ == "__main__":
    key = jax.random.PRNGKey(0)
    kx, kp = jax.random.split(key)

    batch, input_size, hidden_size = 8, 21, 256
    x = jax.random.normal(kx, (batch, input_size), dtype=jnp.float32)
    params = init_params(kp, input_size=input_size, hidden_size=hidden_size)
    packed = pack_params(params)

    out = expert_driving_net(x, packed)
    out = jax.block_until_ready(out)

    ref = expert_driving_net_ref(x, params)
    assert out.shape == (batch, 3)
    # bf16 matmul operands (f32 accumulation) vs. the pure-f32 reference,
    # hence the loosened tolerance per the review's correctness note.
    assert jnp.allclose(out, ref, atol=3e-2, rtol=3e-2), "mismatch vs JAX reference"

    print("KERNEL_OK")
</pallas_src>

<mosaic_0001>
module attributes {stable_mosaic.version = 11 : i64} {
  func.func @expert_driving_kernel(%arg0: i32, %arg1: memref<8x32xf32, #tpu.memory_space<vmem>>, %arg2: memref<32x256xbf16, #tpu.memory_space<vmem>>, %arg3: memref<1x256xf32, #tpu.memory_space<vmem>>, %arg4: memref<256x256xbf16, #tpu.memory_space<vmem>>, %arg5: memref<1x256xf32, #tpu.memory_space<vmem>>, %arg6: memref<256x128xbf16, #tpu.memory_space<vmem>>, %arg7: memref<1x128xf32, #tpu.memory_space<vmem>>, %arg8: memref<128x256xbf16, #tpu.memory_space<vmem>>, %arg9: memref<1x256xf32, #tpu.memory_space<vmem>>, %arg10: memref<256x128xbf16, #tpu.memory_space<vmem>>, %arg11: memref<1x128xf32, #tpu.memory_space<vmem>>, %arg12: memref<8x128xf32, #tpu.memory_space<vmem>>) attributes {dimension_semantics = [#tpu.dimension_semantics<parallel>], iteration_bounds = array<i64: 1>, scalar_prefetch = 0 : i64, scratch_operands = 0 : i64, tpu.core_type = #tpu.core_type<tc>, window_params = [{transform_indices = @transform_0, window_bounds = array<i64: 8, 32>}, {pipeline_mode = #tpu.pipeline_mode<synchronous>, transform_indices = @transform_1, window_bounds = array<i64: 32, 256>}, {pipeline_mode = #tpu.pipeline_mode<synchronous>, transform_indices = @transform_2, window_bounds = array<i64: 1, 256>}, {pipeline_mode = #tpu.pipeline_mode<synchronous>, transform_indices = @transform_3, window_bounds = array<i64: 256, 256>}, {pipeline_mode = #tpu.pipeline_mode<synchronous>, transform_indices = @transform_4, window_bounds = array<i64: 1, 256>}, {pipeline_mode = #tpu.pipeline_mode<synchronous>, transform_indices = @transform_5, window_bounds = array<i64: 256, 128>}, {pipeline_mode = #tpu.pipeline_mode<synchronous>, transform_indices = @transform_6, window_bounds = array<i64: 1, 128>}, {pipeline_mode = #tpu.pipeline_mode<synchronous>, transform_indices = @transform_7, window_bounds = array<i64: 128, 256>}, {pipeline_mode = #tpu.pipeline_mode<synchronous>, transform_indices = @transform_8, window_bounds = array<i64: 1, 256>}, {pipeline_mode = #tpu.pipeline_mode<synchronous>, transform_indices = @transform_9, window_bounds = array<i64: 256, 128>}, {pipeline_mode = #tpu.pipeline_mode<synchronous>, transform_indices = @transform_10, window_bounds = array<i64: 1, 128>}, {transform_indices = @transform_11, window_bounds = array<i64: 8, 128>}]} {
    %c0 = arith.constant 0 : index
    %c0_0 = arith.constant 0 : index
    %0 = vector.load %arg1[%c0, %c0_0] : memref<8x32xf32, #tpu.memory_space<vmem>>, vector<8x32xf32>
    %1 = arith.truncf %0 : vector<8x32xf32> to vector<8x32xbf16>
    %c0_1 = arith.constant 0 : index
    %c0_2 = arith.constant 0 : index
    %2 = vector.load %arg2[%c0_1, %c0_2] : memref<32x256xbf16, #tpu.memory_space<vmem>>, vector<32x256xbf16>
    %cst = arith.constant dense<0.000000e+00> : vector<8x256xf32>
    %3 = tpu.matmul %1, %2, %cst {dimension_numbers = #tpu.dot_dimension_numbers<[1], [0], [0], [1], [0, 0, 1, 1], [], []>} : vector<8x32xbf16>, vector<32x256xbf16>, vector<8x256xf32> -> vector<8x256xf32>
    %c0_3 = arith.constant 0 : index
    %c0_4 = arith.constant 0 : index
    %4 = vector.load %arg3[%c0_3, %c0_4] : memref<1x256xf32, #tpu.memory_space<vmem>>, vector<1x256xf32>
    %5 = vector.broadcast %4 : vector<1x256xf32> to vector<8x256xf32>
    %6 = arith.addf %3, %5 : vector<8x256xf32>
    %cst_5 = arith.constant 0.000000e+00 : f32
    %7 = vector.broadcast %cst_5 : f32 to vector<8x256xf32>
    %8 = arith.maximumf %6, %7 : vector<8x256xf32>
    %9 = arith.truncf %8 : vector<8x256xf32> to vector<8x256xbf16>
    %c0_6 = arith.constant 0 : index
    %c0_7 = arith.constant 0 : index
    %10 = vector.load %arg4[%c0_6, %c0_7] : memref<256x256xbf16, #tpu.memory_space<vmem>>, vector<256x256xbf16>
    %cst_8 = arith.constant dense<0.000000e+00> : vector<8x256xf32>
    %11 = tpu.matmul %9, %10, %cst_8 {dimension_numbers = #tpu.dot_dimension_numbers<[1], [0], [0], [1], [0, 0, 1, 1], [], []>} : vector<8x256xbf16>, vector<256x256xbf16>, vector<8x256xf32> -> vector<8x256xf32>
    %c0_9 = arith.constant 0 : index
    %c0_10 = arith.constant 0 : index
    %12 = vector.load %arg5[%c0_9, %c0_10] : memref<1x256xf32, #tpu.memory_space<vmem>>, vector<1x256xf32>
    %13 = vector.broadcast %12 : vector<1x256xf32> to vector<8x256xf32>
    %14 = arith.addf %11, %13 : vector<8x256xf32>
    %cst_11 = arith.constant 0.000000e+00 : f32
    %15 = vector.broadcast %cst_11 : f32 to vector<8x256xf32>
    %16 = arith.maximumf %14, %15 : vector<8x256xf32>
    %17 = arith.truncf %16 : vector<8x256xf32> to vector<8x256xbf16>
    %c0_12 = arith.constant 0 : index
    %c0_13 = arith.constant 0 : index
    %18 = vector.load %arg6[%c0_12, %c0_13] : memref<256x128xbf16, #tpu.memory_space<vmem>>, vector<256x128xbf16>
    %cst_14 = arith.constant dense<0.000000e+00> : vector<8x128xf32>
    %19 = tpu.matmul %17, %18, %cst_14 {dimension_numbers = #tpu.dot_dimension_numbers<[1], [0], [0], [1], [0, 0, 1, 1], [], []>} : vector<8x256xbf16>, vector<256x128xbf16>, vector<8x128xf32> -> vector<8x128xf32>
    %c0_15 = arith.constant 0 : index
    %c0_16 = arith.constant 0 : index
    %20 = vector.load %arg7[%c0_15, %c0_16] : memref<1x128xf32, #tpu.memory_space<vmem>>, vector<1x128xf32>
    %21 = vector.broadcast %20 : vector<1x128xf32> to vector<8x128xf32>
    %22 = arith.addf %19, %21 : vector<8x128xf32>
    %cst_17 = arith.constant 0.000000e+00 : f32
    %23 = vector.broadcast %cst_17 : f32 to vector<8x128xf32>
    %24 = arith.maximumf %22, %23 : vector<8x128xf32>
    %25 = arith.truncf %24 : vector<8x128xf32> to vector<8x128xbf16>
    %c0_18 = arith.constant 0 : index
    %c0_19 = arith.constant 0 : index
    %26 = vector.load %arg8[%c0_18, %c0_19] : memref<128x256xbf16, #tpu.memory_space<vmem>>, vector<128x256xbf16>
    %cst_20 = arith.constant dense<0.000000e+00> : vector<8x256xf32>
    %27 = tpu.matmul %25, %26, %cst_20 {dimension_numbers = #tpu.dot_dimension_numbers<[1], [0], [0], [1], [0, 0, 1, 1], [], []>} : vector<8x128xbf16>, vector<128x256xbf16>, vector<8x256xf32> -> vector<8x256xf32>
    %c0_21 = arith.constant 0 : index
    %c0_22 = arith.constant 0 : index
    %28 = vector.load %arg9[%c0_21, %c0_22] : memref<1x256xf32, #tpu.memory_space<vmem>>, vector<1x256xf32>
    %29 = vector.broadcast %28 : vector<1x256xf32> to vector<8x256xf32>
    %30 = arith.addf %27, %29 : vector<8x256xf32>
    %cst_23 = arith.constant 0.000000e+00 : f32
    %31 = vector.broadcast %cst_23 : f32 to vector<8x256xf32>
    %32 = arith.maximumf %30, %31 : vector<8x256xf32>
    %33 = arith.truncf %32 : vector<8x256xf32> to vector<8x256xbf16>
    %c0_24 = arith.constant 0 : index
    %c0_25 = arith.constant 0 : index
    %34 = vector.load %arg10[%c0_24, %c0_25] : memref<256x128xbf16, #tpu.memory_space<vmem>>, vector<256x128xbf16>
    %cst_26 = arith.constant dense<0.000000e+00> : vector<8x128xf32>
    %35 = tpu.matmul %33, %34, %cst_26 {dimension_numbers = #tpu.dot_dimension_numbers<[1], [0], [0], [1], [0, 0, 1, 1], [], []>} : vector<8x256xbf16>, vector<256x128xbf16>, vector<8x128xf32> -> vector<8x128xf32>
    %c0_27 = arith.constant 0 : index
    %c0_28 = arith.constant 0 : index
    %36 = vector.load %arg11[%c0_27, %c0_28] : memref<1x128xf32, #tpu.memory_space<vmem>>, vector<1x128xf32>
    %37 = vector.broadcast %36 : vector<1x128xf32> to vector<8x128xf32>
    %38 = arith.addf %35, %37 : vector<8x128xf32>
    %39 = tpu.iota {dimensions = array<i32: 1>} : vector<8x128xi32>
    %c2_i32 = arith.constant 2 : i32
    %40 = vector.broadcast %c2_i32 : i32 to vector<8x128xi32>
    %41 = arith.cmpi eq, %39, %40 : vector<8x128xi32>
    %cst_29 = arith.constant 2.000000e+00 : f32
    %42 = vector.broadcast %cst_29 : f32 to vector<8x128xf32>
    %43 = arith.mulf %42, %38 : vector<8x128xf32>
    %44 = arith.select %41, %43, %38 : vector<8x128xi1>, vector<8x128xf32>
    %45 = arith.negf %44 : vector<8x128xf32>
    %46 = math.exp %45 : vector<8x128xf32>
    %cst_30 = arith.constant 1.000000e+00 : f32
    %47 = vector.broadcast %cst_30 : f32 to vector<8x128xf32>
    %48 = arith.addf %47, %46 : vector<8x128xf32>
    %49 = arith.divf %47, %48 : vector<8x128xf32>
    %cst_31 = arith.constant 2.000000e+00 : f32
    %50 = vector.broadcast %cst_31 : f32 to vector<8x128xf32>
    %51 = arith.mulf %50, %49 : vector<8x128xf32>
    %cst_32 = arith.constant 1.000000e+00 : f32
    %52 = vector.broadcast %cst_32 : f32 to vector<8x128xf32>
    %53 = arith.subf %51, %52 : vector<8x128xf32>
    %54 = arith.select %41, %53, %49 : vector<8x128xi1>, vector<8x128xf32>
    %c0_33 = arith.constant 0 : index
    %c0_34 = arith.constant 0 : index
    %55 = vector.load %arg12[%c0_33, %c0_34] : memref<8x128xf32, #tpu.memory_space<vmem>>, vector<8x128xf32>
    tpu.vector_store %arg12[%c0_33, %c0_34], %54 {strides = array<i32>} : memref<8x128xf32, #tpu.memory_space<vmem>>, vector<8x128xf32>,
    return
  }
  func.func @transform_0(%arg0: i32) -> (i32, i32) {
    %c0_i32 = arith.constant 0 : i32
    %c0_i32_0 = arith.constant 0 : i32
    return %arg0, %c0_i32 : i32, i32
  }
  func.func @transform_1(%arg0: i32) -> (i32, i32) {
    %c0_i32 = arith.constant 0 : i32
    %c0_i32_0 = arith.constant 0 : i32
    %c0_i32_1 = arith.constant 0 : i32
    return %c0_i32, %c0_i32_0 : i32, i32
  }
  func.func @transform_2(%arg0: i32) -> (i32, i32) {
    %c0_i32 = arith.constant 0 : i32
    %c0_i32_0 = arith.constant 0 : i32
    %c0_i32_1 = arith.constant 0 : i32
    return %c0_i32, %c0_i32_0 : i32, i32
  }
  func.func @transform_3(%arg0: i32) -> (i32, i32) {
    %c0_i32 = arith.constant 0 : i32
    %c0_i32_0 = arith.constant 0 : i32
    %c0_i32_1 = arith.constant 0 : i32
    return %c0_i32, %c0_i32_0 : i32, i32
  }
  func.func @transform_4(%arg0: i32) -> (i32, i32) {
    %c0_i32 = arith.constant 0 : i32
    %c0_i32_0 = arith.constant 0 : i32
    %c0_i32_1 = arith.constant 0 : i32
    return %c0_i32, %c0_i32_0 : i32, i32
  }
  func.func @transform_5(%arg0: i32) -> (i32, i32) {
    %c0_i32 = arith.constant 0 : i32
    %c0_i32_0 = arith.constant 0 : i32
    %c0_i32_1 = arith.constant 0 : i32
    return %c0_i32, %c0_i32_0 : i32, i32
  }
  func.func @transform_6(%arg0: i32) -> (i32, i32) {
    %c0_i32 = arith.constant 0 : i32
    %c0_i32_0 = arith.constant 0 : i32
    %c0_i32_1 = arith.constant 0 : i32
    return %c0_i32, %c0_i32_0 : i32, i32
  }
  func.func @transform_7(%arg0: i32) -> (i32, i32) {
    %c0_i32 = arith.constant 0 : i32
    %c0_i32_0 = arith.constant 0 : i32
    %c0_i32_1 = arith.constant 0 : i32
    return %c0_i32, %c0_i32_0 : i32, i32
  }
  func.func @transform_8(%arg0: i32) -> (i32, i32) {
    %c0_i32 = arith.constant 0 : i32
    %c0_i32_0 = arith.constant 0 : i32
    %c0_i32_1 = arith.constant 0 : i32
    return %c0_i32, %c0_i32_0 : i32, i32
  }
  func.func @transform_9(%arg0: i32) -> (i32, i32) {
    %c0_i32 = arith.constant 0 : i32
    %c0_i32_0 = arith.constant 0 : i32
    %c0_i32_1 = arith.constant 0 : i32
    return %c0_i32, %c0_i32_0 : i32, i32
  }
  func.func @transform_10(%arg0: i32) -> (i32, i32) {
    %c0_i32 = arith.constant 0 : i32
    %c0_i32_0 = arith.constant 0 : i32
    %c0_i32_1 = arith.constant 0 : i32
    return %c0_i32, %c0_i32_0 : i32, i32
  }
  func.func @transform_11(%arg0: i32) -> (i32, i32) {
    %c0_i32 = arith.constant 0 : i32
    %c0_i32_0 = arith.constant 0 : i32
    return %arg0, %c0_i32 : i32, i32
  }
}

</mosaic_0001>

<llo_original>
// kernel: tpu_custom_call.1
$region0: #{tpu_custom_call.1}
  #allocation0 [shape = 'u32[]', space=smem, size = 0x4, offset = 0x4, fixed_abs, tag = 'smem constant byte address 0x4 - core index']
  #allocation1 [shape = 'u32[72,128]{1,0:T(1,128)}', space=vmem, size = 0x9000, scoped, tag = 'internal scratch']
  %s0 = inlined_call_operand.hbm [shape: f32[8,32], index: 0, kind: input, shape index: {}]
  %s1 = inlined_call_operand.hbm [shape: bf16[32,256], index: 1, kind: input, shape index: {}]
  %s2 = inlined_call_operand.hbm [shape: f32[1,256], index: 2, kind: input, shape index: {}]
  %s3 = inlined_call_operand.hbm [shape: bf16[256,256], index: 3, kind: input, shape index: {}]
  %s4 = inlined_call_operand.vmem [shape: f32[1,256], index: 4, kind: input, shape index: {}]
  %s5 = inlined_call_operand.hbm [shape: bf16[256,128], index: 5, kind: input, shape index: {}]
  %s6 = inlined_call_operand.vmem [shape: f32[1,128], index: 6, kind: input, shape index: {}]
  %s7 = inlined_call_operand.hbm [shape: bf16[128,256], index: 7, kind: input, shape index: {}]
  %s8 = inlined_call_operand.vmem [shape: f32[1,256], index: 8, kind: input, shape index: {}]
  %s9 = inlined_call_operand.hbm [shape: bf16[256,128], index: 9, kind: input, shape index: {}]
  %s10 = inlined_call_operand.vmem [shape: f32[1,128], index: 10, kind: input, shape index: {}]
  %s11 = inlined_call_operand.hbm [shape: f32[8,128], index: 11, kind: output, shape index: {}]
  %s12 = sld [smem:[#allocation0]]
  $region82: #{tpu_custom_call.1} parent=0
    _
  %s14 = ssub.s32 1, %s12
  %s15 = scalar_select 0, %s14, %s12
  $region1: #{tpu_custom_call.1} parent=0
    #allocation2 [shape = 'u8[4096]{0}', space=vmem, size = 0x1000, scoped, tag = 'input window, operand 0, single buffered']
    #allocation3 [shape = 's32[1]{0}', space=sflag, size = 0x4, scoped, tag = 'scoped memory for tpu_custom_call.1']
    #allocation4 [shape = 's32[1]{0}', space=sflag, size = 0x4, scoped, tag = 'scoped memory for tpu_custom_call.1']
    #allocation5 [shape = 'u8[16384]{0}', space=vmem, size = 0x4000, scoped, tag = 'input window, operand 1, single buffered']
    #allocation6 [shape = 's32[1]{0}', space=sflag, size = 0x4, scoped, tag = 'scoped memory for tpu_custom_call.1']
    #allocation7 [shape = 'u8[1024]{0}', space=vmem, size = 0x400, scoped, tag = 'input window, operand 2, single buffered']
    #allocation8 [shape = 'u8[131072]{0}', space=vmem, size = 0x20000, scoped, tag = 'input window, operand 3, single buffered']
    #allocation9 [shape = 's32[1]{0}', space=sflag, size = 0x4, scoped, tag = 'scoped memory for tpu_custom_call.1']
    #allocation10 [shape = 'u8[65536]{0}', space=vmem, size = 0x10000, scoped, tag = 'input window, operand 5, single buffered']
    #allocation11 [shape = 'u8[65536]{0}', space=vmem, size = 0x10000, scoped, tag = 'input window, operand 7, single buffered']
    #allocation12 [shape = 's32[1]{0}', space=sflag, size = 0x4, scoped, tag = 'scoped memory for tpu_custom_call.1']
    #allocation13 [shape = 'u8[65536]{0}', space=vmem, size = 0x10000, scoped, tag = 'input window, operand 9, single buffered']
    #allocation14 [shape = 'u8[4096]{0}', space=vmem, size = 0x1000, scoped, tag = 'output window, operand 0, single buffered']
    %16 = vsyncpa [#allocation3], 0
    %17 = vsyncpa [#allocation6], 0
    %18 = vsyncpa [#allocation9], 0
    %19 = vsyncpa [#allocation12], 0
    %20 = vsyncpa [#allocation4], 0
    // Predicated region
    $region2: #{tpu_custom_call.1} parent=1 // pred_check
      _
    $region3: #{tpu_custom_call.1} parent=1 // pred_check_branch
      %22 = sbr.rel (0) target = $region5
    $region4: #{tpu_custom_call.1} parent=1 // pred_region
      %24 = vsyncadd [#allocation3], 0
      %s26 = sshll.u32 %s0, 4
      %s27 = int_to_ptr.hbm [resolvable:$true] %s26
      %s28 = sshll.u32 [#allocation2], 4
      %s29 = int_to_ptr.vmem [resolvable:$true] %s28
      %31 = dma.hbm_to_vmem [thread:$0]  %s27, 128, %s29, [#allocation3]
    $region5: #{tpu_custom_call.1} parent=1 // pred_fallthru
      _
    // Predicated region
    $region6: #{tpu_custom_call.1} parent=1 // pred_check
      _
    $region7: #{tpu_custom_call.1} parent=1 // pred_check_branch
      %33 = sbr.rel (0) target = $region9
    $region8: #{tpu_custom_call.1} parent=1 // pred_region
      %35 = vsyncadd [#allocation6], 0
      %s36 = sshll.u32 %s1, 4
      %s37 = int_to_ptr.hbm [resolvable:$true] %s36
      %s38 = sshll.u32 [#allocation5], 4
      %s39 = int_to_ptr.vmem [resolvable:$true] %s38
      %44 = dma.hbm_to_vmem [thread:$0]  %s37, 512, %s39, [#allocation6], 128, 128, 8
    $region9: #{tpu_custom_call.1} parent=1 // pred_fallthru
      _
    // Predicated region
    $region10: #{tpu_custom_call.1} parent=1 // pred_check
      _
    $region11: #{tpu_custom_call.1} parent=1 // pred_check_branch
      %46 = sbr.rel (0) target = $region13
    $region12: #{tpu_custom_call.1} parent=1 // pred_region
      %48 = vsyncadd [#allocation6], 0
      %s50 = sshll.u32 %s2, 4
      %s51 = int_to_ptr.hbm [resolvable:$true] %s50
      %s52 = sshll.u32 [#allocation7], 4
      %s53 = int_to_ptr.vmem [resolvable:$true] %s52
      %55 = dma.hbm_to_vmem [thread:$0]  %s51, 32, %s53, [#allocation6]
    $region13: #{tpu_custom_call.1} parent=1 // pred_fallthru
      _
    // Predicated region
    $region14: #{tpu_custom_call.1} parent=1 // pred_check
      _
    $region15: #{tpu_custom_call.1} parent=1 // pred_check_branch
      %57 = sbr.rel (0) target = $region17
    $region16: #{tpu_custom_call.1} parent=1 // pred_region
      %59 = vsyncadd [#allocation9], 0
      %s60 = sshll.u32 %s3, 4
      %s61 = int_to_ptr.hbm [resolvable:$true] %s60
      %s62 = sshll.u32 [#allocation8], 4
      %s63 = int_to_ptr.vmem [resolvable:$true] %s62
      %68 = dma.hbm_to_vmem [thread:$0]  %s61, 4096, %s63, [#allocation9], 128, 128, 8
    $region17: #{tpu_custom_call.1} parent=1 // pred_fallthru
      _
    // Predicated region
    $region18: #{tpu_custom_call.1} parent=1 // pred_check
      _
    $region19: #{tpu_custom_call.1} parent=1 // pred_check_branch
      %70 = sbr.rel (0) target = $region21
    $region20: #{tpu_custom_call.1} parent=1 // pred_region
      _
    $region21: #{tpu_custom_call.1} parent=1 // pred_fallthru
      _
    // Predicated region
    $region22: #{tpu_custom_call.1} parent=1 // pred_check
      _
    $region23: #{tpu_custom_call.1} parent=1 // pred_check_branch
      %72 = sbr.rel (0) target = $region25
    $region24: #{tpu_custom_call.1} parent=1 // pred_region
      %74 = vsyncadd [#allocation9], 0
      %s75 = sshll.u32 %s5, 4
      %s76 = int_to_ptr.hbm [resolvable:$true] %s75
      %s77 = sshll.u32 [#allocation10], 4
      %s78 = int_to_ptr.vmem [resolvable:$true] %s77
      %83 = dma.hbm_to_vmem [thread:$0]  %s76, 2048, %s78, [#allocation9], 64, 64, 4
    $region25: #{tpu_custom_call.1} parent=1 // pred_fallthru
      _
    // Predicated region
    $region26: #{tpu_custom_call.1} parent=1 // pred_check
      _
    $region27: #{tpu_custom_call.1} parent=1 // pred_check_branch
      %85 = sbr.rel (0) target = $region29
    $region28: #{tpu_custom_call.1} parent=1 // pred_region
      _
    $region29: #{tpu_custom_call.1} parent=1 // pred_fallthru
      _
    // Predicated region
    $region30: #{tpu_custom_call.1} parent=1 // pred_check
      _
    $region31: #{tpu_custom_call.1} parent=1 // pred_check_branch
      %87 = sbr.rel (0) target = $region33
    $region32: #{tpu_custom_call.1} parent=1 // pred_region
      %89 = vsyncadd [#allocation12], 0
      %s90 = sshll.u32 %s7, 4
      %s91 = int_to_ptr.hbm [resolvable:$true] %s90
      %s92 = sshll.u32 [#allocation11], 4
      %s93 = int_to_ptr.vmem [resolvable:$true] %s92
      %98 = dma.hbm_to_vmem [thread:$0]  %s91, 2048, %s93, [#allocation12], 128, 128, 8
    $region33: #{tpu_custom_call.1} parent=1 // pred_fallthru
      _
    // Predicated region
    $region34: #{tpu_custom_call.1} parent=1 // pred_check
      _
    $region35: #{tpu_custom_call.1} parent=1 // pred_check_branch
      %100 = sbr.rel (0) target = $region37
    $region36: #{tpu_custom_call.1} parent=1 // pred_region
      _
    $region37: #{tpu_custom_call.1} parent=1 // pred_fallthru
      _
    // Predicated region
    $region38: #{tpu_custom_call.1} parent=1 // pred_check
      _
    $region39: #{tpu_custom_call.1} parent=1 // pred_check_branch
      %102 = sbr.rel (0) target = $region41
    $region40: #{tpu_custom_call.1} parent=1 // pred_region
      %104 = vsyncadd [#allocation12], 0
      %s105 = sshll.u32 %s9, 4
      %s106 = int_to_ptr.hbm [resolvable:$true] %s105
      %s107 = sshll.u32 [#allocation13], 4
      %s108 = int_to_ptr.vmem [resolvable:$true] %s107
      %113 = dma.hbm_to_vmem [thread:$0]  %s106, 2048, %s108, [#allocation12], 64, 64, 4
    $region41: #{tpu_custom_call.1} parent=1 // pred_fallthru
      _
    // Predicated region
    $region42: #{tpu_custom_call.1} parent=1 // pred_check
      _
    $region43: #{tpu_custom_call.1} parent=1 // pred_check_branch
      %115 = sbr.rel (0) target = $region45
    $region44: #{tpu_custom_call.1} parent=1 // pred_region
      _
    $region45: #{tpu_custom_call.1} parent=1 // pred_fallthru
      _
    // Predicated region
    $region46: #{tpu_custom_call.1} parent=1 // pred_check
      _
    $region47: #{tpu_custom_call.1} parent=1 // pred_check_branch
      %117 = sbr.rel (0) target = $region49
    $region48: #{tpu_custom_call.1} parent=1 // pred_region
      %119 = dma.done [#allocation3], 128
    $region49: #{tpu_custom_call.1} parent=1 // pred_fallthru
      _
    // Predicated region
    $region50: #{tpu_custom_call.1} parent=1 // pred_check
      _
    $region51: #{tpu_custom_call.1} parent=1 // pred_check_branch
      %121 = sbr.rel (0) target = $region53
    $region52: #{tpu_custom_call.1} parent=1 // pred_region
      %123 = dma.done [#allocation6], 512
    $region53: #{tpu_custom_call.1} parent=1 // pred_fallthru
      _
    // Predicated region
    $region54: #{tpu_custom_call.1} parent=1 // pred_check
      _
    $region55: #{tpu_custom_call.1} parent=1 // pred_check_branch
      %125 = sbr.rel (0) target = $region57
    $region56: #{tpu_custom_call.1} parent=1 // pred_region
      %127 = dma.done [#allocation6], 32
    $region57: #{tpu_custom_call.1} parent=1 // pred_fallthru
      _
    // Predicated region
    $region58: #{tpu_custom_call.1} parent=1 // pred_check
      _
    $region59: #{tpu_custom_call.1} parent=1 // pred_check_branch
      %129 = sbr.rel (0) target = $region61
    $region60: #{tpu_custom_call.1} parent=1 // pred_region
      %131 = dma.done [#allocation9], 4096
    $region61: #{tpu_custom_call.1} parent=1 // pred_fallthru
      _
    // Predicated region
    $region62: #{tpu_custom_call.1} parent=1 // pred_check
      _
    $region63: #{tpu_custom_call.1} parent=1 // pred_check_branch
      %133 = sbr.rel (0) target = $region65
    $region64: #{tpu_custom_call.1} parent=1 // pred_region
      %135 = dma.done [#allocation9], 2048
    $region65: #{tpu_custom_call.1} parent=1 // pred_fallthru
      _
    // Predicated region
    $region66: #{tpu_custom_call.1} parent=1 // pred_check
      _
    $region67: #{tpu_custom_call.1} parent=1 // pred_check_branch
      %137 = sbr.rel (0) target = $region69
    $region68: #{tpu_custom_call.1} parent=1 // pred_region
      %139 = dma.done [#allocation12], 2048
    $region69: #{tpu_custom_call.1} parent=1 // pred_fallthru
      _
    // Predicated region
    $region70: #{tpu_custom_call.1} parent=1 // pred_check
      _
    $region71: #{tpu_custom_call.1} parent=1 // pred_check_branch
      %141 = sbr.rel (0) target = $region73
    $region72: #{tpu_custom_call.1} parent=1 // pred_region
      %143 = dma.done [#allocation12], 2048
    $region73: #{tpu_custom_call.1} parent=1 // pred_fallthru
      _
    %v145 = vld [vmem:[#allocation2] sm:$0xff]
    %v146 = vpack.c.bf16 %v145, %v145
    %v147 = vld [vmem:[#allocation5] sm:$0xff]
    %v148 = vld [vmem:[#allocation5 + $0x8] sm:$0xff]
    %v149 = vld [vmem:[#allocation5 + $0x10] sm:$0xff]
    %v150 = vld [vmem:[#allocation5 + $0x18] sm:$0xff]
    %v151 = vld [vmem:[#allocation7] sm:$0x3]
    %v153 = vperm.slane %v151, 0
    %v154 = vperm.slane %v151, 1
    %v161 = vunpack.c.l.b16 %v147
    %v162 = vunpack.c.h.b16 %v147
    %v163 = vunpack.c.l.b16 %v148
    %v164 = vunpack.c.h.b16 %v148
    %v165 = vunpack.c.l.b16 %v149
    %v166 = vunpack.c.h.b16 %v149
    %v167 = vunpack.c.l.b16 %v150
    %v168 = vunpack.c.h.b16 %v150
    %v169 = vpack.c.b16 %v163, %v161
    %v170 = vpack.c.b16 %v164, %v162
    %v171 = vpack.c.b16 %v167, %v165
    %v172 = vpack.c.b16 %v168, %v166
    %vm177 = vcmask 261120
    %v179 = vsel %vm177, %v146, 0
    %181 = vmatpush.bf16.msra.mxu0 0
    %182 = vmatpush.bf16.msra.mxu0 0
    %183 = vmatpush.bf16.msra.mxu0 0
    %184 = vmatpush.bf16.msra.mxu0 0
    %185 = vmatpush.bf16.msra.mxu0 0
    %186 = vmatpush.bf16.msra.mxu0 0
    %187 = vmatpush.bf16.msra.mxu0 %v171
    %188 = vmatpush.bf16.msra.mxu0 %v169
    %189 = vmatmul.bf16.gmra.mxu0 %v179
    %v190 = vpop.f32.mrf.mxu0
    %v191 = vadd.f32 %v153, %v190
    %v192 = vpop.f32.mrf.mxu0
    %193 = vdwg.mxu0
    %194 = vmatpush.bf16.msra.mxu0 0
    %195 = vmatpush.bf16.msra.mxu0 0
    %196 = vmatpush.bf16.msra.mxu0 0
    %197 = vmatpush.bf16.msra.mxu0 0
    %198 = vmatpush.bf16.msra.mxu0 0
    %199 = vmatpush.bf16.msra.mxu0 0
    %200 = vmatpush.bf16.msra.mxu0 %v172
    %201 = vmatpush.bf16.msra.mxu0 %v170
    %202 = vmatmul.bf16.gmra.mxu0 %v179
    %v203 = vpop.f32.mrf.mxu0
    %v204 = vadd.f32 %v154, %v203
    %v205 = vpop.f32.mrf.mxu0
    %206 = vdwg.mxu0
    %v207 = vmax.f32 %v191, 0.0
    %v208 = vmax.f32 %v204, 0.0
    %v209 = vpack.c.bf16 %v207, %v207
    %v210 = vpack.c.bf16 %v208, %v208
    %v211 = vld [vmem:[#allocation8] sm:$0xff]
    %v212 = vld [vmem:[#allocation8 + $0x8] sm:$0xff]
    %v213 = vld [vmem:[#allocation8 + $0x10] sm:$0xff]
    %v214 = vld [vmem:[#allocation8 + $0x18] sm:$0xff]
    %v215 = vld [vmem:[#allocation8 + $0x20] sm:$0xff]
    %v216 = vld [vmem:[#allocation8 + $0x28] sm:$0xff]
    %v217 = vld [vmem:[#allocation8 + $0x30] sm:$0xff]
    %v218 = vld [vmem:[#allocation8 + $0x38] sm:$0xff]
    %v219 = vld [vmem:[#allocation8 + $0x40] sm:$0xff]
    %v220 = vld [vmem:[#allocation8 + $0x48] sm:$0xff]
    %v221 = vld [vmem:[#allocation8 + $0x50] sm:$0xff]
    %v222 = vld [vmem:[#allocation8 + $0x58] sm:$0xff]
    %v223 = vld [vmem:[#allocation8 + $0x60] sm:$0xff]
    %v224 = vld [vmem:[#allocation8 + $0x68] sm:$0xff]
    %v225 = vld [vmem:[#allocation8 + $0x70] sm:$0xff]
    %v226 = vld [vmem:[#allocation8 + $0x78] sm:$0xff]
    %v227 = vld [vmem:[#allocation8 + $0x80] sm:$0xff]
    %v228 = vld [vmem:[#allocation8 + $0x88] sm:$0xff]
    %v229 = vld [vmem:[#allocation8 + $0x90] sm:$0xff]
    %v230 = vld [vmem:[#allocation8 + $0x98] sm:$0xff]
    %v231 = vld [vmem:[#allocation8 + $0xa0] sm:$0xff]
    %v232 = vld [vmem:[#allocation8 + $0xa8] sm:$0xff]
    %v233 = vld [vmem:[#allocation8 + $0xb0] sm:$0xff]
    %v234 = vld [vmem:[#allocation8 + $0xb8] sm:$0xff]
    %v235 = vld [vmem:[#allocation8 + $0xc0] sm:$0xff]
    %v236 = vld [vmem:[#allocation8 + $0xc8] sm:$0xff]
    %v237 = vld [vmem:[#allocation8 + $0xd0] sm:$0xff]
    %v238 = vld [vmem:[#allocation8 + $0xd8] sm:$0xff]
    %v239 = vld [vmem:[#allocation8 + $0xe0] sm:$0xff]
    %v240 = vld [vmem:[#allocation8 + $0xe8] sm:$0xff]
    %v241 = vld [vmem:[#allocation8 + $0xf0] sm:$0xff]
    %v242 = vld [vmem:[#allocation8 + $0xf8] sm:$0xff]
    %v243 = vld [vmem:[%s4] sm:$0x3]
    %v245 = vperm.slane %v243, 0
    %v246 = vperm.slane %v243, 1
    %v281 = vunpack.c.l.b16 %v211
    %v282 = vunpack.c.h.b16 %v211
    %v283 = vunpack.c.l.b16 %v212
    %v284 = vunpack.c.h.b16 %v212
    %v285 = vunpack.c.l.b16 %v213
    %v286 = vunpack.c.h.b16 %v213
    %v287 = vunpack.c.l.b16 %v214
    %v288 = vunpack.c.h.b16 %v214
    %v289 = vunpack.c.l.b16 %v215
    %v290 = vunpack.c.h.b16 %v215
    %v291 = vunpack.c.l.b16 %v216
    %v292 = vunpack.c.h.b16 %v216
    %v293 = vunpack.c.l.b16 %v217
    %v294 = vunpack.c.h.b16 %v217
    %v295 = vunpack.c.l.b16 %v218
    %v296 = vunpack.c.h.b16 %v218
    %v297 = vunpack.c.l.b16 %v219
    %v298 = vunpack.c.h.b16 %v219
    %v299 = vunpack.c.l.b16 %v220
    %v300 = vunpack.c.h.b16 %v220
    %v301 = vunpack.c.l.b16 %v221
    %v302 = vunpack.c.h.b16 %v221
    %v303 = vunpack.c.l.b16 %v222
    %v304 = vunpack.c.h.b16 %v222
    %v305 = vunpack.c.l.b16 %v223
    %v306 = vunpack.c.h.b16 %v223
    %v307 = vunpack.c.l.b16 %v224
    %v308 = vunpack.c.h.b16 %v224
    %v309 = vunpack.c.l.b16 %v225
    %v310 = vunpack.c.h.b16 %v225
    %v311 = vunpack.c.l.b16 %v226
    %v312 = vunpack.c.h.b16 %v226
    %v313 = vunpack.c.l.b16 %v227
    %v314 = vunpack.c.h.b16 %v227
    %v315 = vunpack.c.l.b16 %v228
    %v316 = vunpack.c.h.b16 %v228
    %v317 = vunpack.c.l.b16 %v229
    %v318 = vunpack.c.h.b16 %v229
    %v319 = vunpack.c.l.b16 %v230
    %v320 = vunpack.c.h.b16 %v230
    %v321 = vunpack.c.l.b16 %v231
    %v322 = vunpack.c.h.b16 %v231
    %v323 = vunpack.c.l.b16 %v232
    %v324 = vunpack.c.h.b16 %v232
    %v325 = vunpack.c.l.b16 %v233
    %v326 = vunpack.c.h.b16 %v233
    %v327 = vunpack.c.l.b16 %v234
    %v328 = vunpack.c.h.b16 %v234
    %v329 = vunpack.c.l.b16 %v235
    %v330 = vunpack.c.h.b16 %v235
    %v331 = vunpack.c.l.b16 %v236
    %v332 = vunpack.c.h.b16 %v236
    %v333 = vunpack.c.l.b16 %v237
    %v334 = vunpack.c.h.b16 %v237
    %v335 = vunpack.c.l.b16 %v238
    %v336 = vunpack.c.h.b16 %v238
    %v337 = vunpack.c.l.b16 %v239
    %v338 = vunpack.c.h.b16 %v239
    %v339 = vunpack.c.l.b16 %v240
    %v340 = vunpack.c.h.b16 %v240
    %v341 = vunpack.c.l.b16 %v241
    %v342 = vunpack.c.h.b16 %v241
    %v343 = vunpack.c.l.b16 %v242
    %v344 = vunpack.c.h.b16 %v242
    %v345 = vpack.c.b16 %v283, %v281
    %v346 = vpack.c.b16 %v284, %v282
    %v347 = vpack.c.b16 %v287, %v285
    %v348 = vpack.c.b16 %v288, %v286
    %v349 = vpack.c.b16 %v291, %v289
    %v350 = vpack.c.b16 %v292, %v290
    %v351 = vpack.c.b16 %v295, %v293
    %v352 = vpack.c.b16 %v296, %v294
    %v353 = vpack.c.b16 %v299, %v297
    %v354 = vpack.c.b16 %v300, %v298
    %v355 = vpack.c.b16 %v303, %v301
    %v356 = vpack.c.b16 %v304, %v302
    %v357 = vpack.c.b16 %v307, %v305
    %v358 = vpack.c.b16 %v308, %v306
    %v359 = vpack.c.b16 %v311, %v309
    %v360 = vpack.c.b16 %v312, %v310
    %v361 = vpack.c.b16 %v315, %v313
    %v362 = vpack.c.b16 %v316, %v314
    %v363 = vpack.c.b16 %v319, %v317
    %v364 = vpack.c.b16 %v320, %v318
    %v365 = vpack.c.b16 %v323, %v321
    %v366 = vpack.c.b16 %v324, %v322
    %v367 = vpack.c.b16 %v327, %v325
    %v368 = vpack.c.b16 %v328, %v326
    %v369 = vpack.c.b16 %v331, %v329
    %v370 = vpack.c.b16 %v332, %v330
    %v371 = vpack.c.b16 %v335, %v333
    %v372 = vpack.c.b16 %v336, %v334
    %v373 = vpack.c.b16 %v339, %v337
    %v374 = vpack.c.b16 %v340, %v338
    %v375 = vpack.c.b16 %v343, %v341
    %v376 = vpack.c.b16 %v344, %v342
    %409 = vmatpush.bf16.msra.mxu0 %v359
    %410 = vmatpush.bf16.msra.mxu0 %v357
    %411 = vmatpush.bf16.msra.mxu0 %v355
    %412 = vmatpush.bf16.msra.mxu0 %v353
    %413 = vmatpush.bf16.msra.mxu0 %v351
    %414 = vmatpush.bf16.msra.mxu0 %v349
    %415 = vmatpush.bf16.msra.mxu0 %v347
    %416 = vmatpush.bf16.msra.mxu0 %v345
    %417 = vmatmul.bf16.gmra.mxu0 %v209
    %v418 = vpop.f32.mrf.mxu0
    %v419 = vadd.f32 %v245, %v418
    %v420 = vpop.f32.mrf.mxu0
    %421 = vdwg.mxu0
    %422 = vmatpush.bf16.msra.mxu0 %v375
    %423 = vmatpush.bf16.msra.mxu0 %v373
    %424 = vmatpush.bf16.msra.mxu0 %v371
    %425 = vmatpush.bf16.msra.mxu0 %v369
    %426 = vmatpush.bf16.msra.mxu0 %v367
    %427 = vmatpush.bf16.msra.mxu0 %v365
    %428 = vmatpush.bf16.msra.mxu0 %v363
    %429 = vmatpush.bf16.msra.mxu0 %v361
    %430 = vmatmul.bf16.gmra.mxu0 %v210
    %v431 = vpop.f32.mrf.mxu0
    %v432 = vadd.f32 %v419, %v431
    %v433 = vpop.f32.mrf.mxu0
    %434 = vdwg.mxu0
    %435 = vmatpush.bf16.msra.mxu0 %v360
    %436 = vmatpush.bf16.msra.mxu0 %v358
    %437 = vmatpush.bf16.msra.mxu0 %v356
    %438 = vmatpush.bf16.msra.mxu0 %v354
    %439 = vmatpush.bf16.msra.mxu0 %v352
    %440 = vmatpush.bf16.msra.mxu0 %v350
    %441 = vmatpush.bf16.msra.mxu0 %v348
    %442 = vmatpush.bf16.msra.mxu0 %v346
    %443 = vmatmul.bf16.gmra.mxu0 %v209
    %v444 = vpop.f32.mrf.mxu0
    %v445 = vadd.f32 %v246, %v444
    %v446 = vpop.f32.mrf.mxu0
    %447 = vdwg.mxu0
    %448 = vmatpush.bf16.msra.mxu0 %v376
    %449 = vmatpush.bf16.msra.mxu0 %v374
    %450 = vmatpush.bf16.msra.mxu0 %v372
    %451 = vmatpush.bf16.msra.mxu0 %v370
    %452 = vmatpush.bf16.msra.mxu0 %v368
    %453 = vmatpush.bf16.msra.mxu0 %v366
    %454 = vmatpush.bf16.msra.mxu0 %v364
    %455 = vmatpush.bf16.msra.mxu0 %v362
    %456 = vmatmul.bf16.gmra.mxu0 %v210
    %v457 = vpop.f32.mrf.mxu0
    %v458 = vadd.f32 %v445, %v457
    %v459 = vpop.f32.mrf.mxu0
    %460 = vdwg.mxu0
    %v461 = vmax.f32 %v432, 0.0
    %v462 = vmax.f32 %v458, 0.0
    %v463 = vpack.c.bf16 %v461, %v461
    %v464 = vpack.c.bf16 %v462, %v462
    %v465 = vld [vmem:[#allocation10] sm:$0xf]
    %v466 = vld [vmem:[#allocation10 + $0x4] sm:$0xf]
    %v467 = vld [vmem:[#allocation10 + $0x8] sm:$0xf]
    %v468 = vld [vmem:[#allocation10 + $0xc] sm:$0xf]
    %v469 = vld [vmem:[#allocation10 + $0x10] sm:$0xf]
    %v470 = vld [vmem:[#allocation10 + $0x14] sm:$0xf]
    %v471 = vld [vmem:[#allocation10 + $0x18] sm:$0xf]
    %v472 = vld [vmem:[#allocation10 + $0x1c] sm:$0xf]
    %v473 = vld [vmem:[#allocation10 + $0x20] sm:$0xf]
    %v474 = vld [vmem:[#allocation10 + $0x24] sm:$0xf]
    %v475 = vld [vmem:[#allocation10 + $0x28] sm:$0xf]
    %v476 = vld [vmem:[#allocation10 + $0x2c] sm:$0xf]
    %v477 = vld [vmem:[#allocation10 + $0x30] sm:$0xf]
    %v478 = vld [vmem:[#allocation10 + $0x34] sm:$0xf]
    %v479 = vld [vmem:[#allocation10 + $0x38] sm:$0xf]
    %v480 = vld [vmem:[#allocation10 + $0x3c] sm:$0xf]
    %v481 = vld [vmem:[#allocation10 + $0x40] sm:$0xf]
    %v482 = vld [vmem:[#allocation10 + $0x44] sm:$0xf]
    %v483 = vld [vmem:[#allocation10 + $0x48] sm:$0xf]
    %v484 = vld [vmem:[#allocation10 + $0x4c] sm:$0xf]
    %v485 = vld [vmem:[#allocation10 + $0x50] sm:$0xf]
    %v486 = vld [vmem:[#allocation10 + $0x54] sm:$0xf]
    %v487 = vld [vmem:[#allocation10 + $0x58] sm:$0xf]
    %v488 = vld [vmem:[#allocation10 + $0x5c] sm:$0xf]
    %v489 = vld [vmem:[#allocation10 + $0x60] sm:$0xf]
    %v490 = vld [vmem:[#allocation10 + $0x64] sm:$0xf]
    %v491 = vld [vmem:[#allocation10 + $0x68] sm:$0xf]
    %v492 = vld [vmem:[#allocation10 + $0x6c] sm:$0xf]
    %v493 = vld [vmem:[#allocation10 + $0x70] sm:$0xf]
    %v494 = vld [vmem:[#allocation10 + $0x74] sm:$0xf]
    %v495 = vld [vmem:[#allocation10 + $0x78] sm:$0xf]
    %v496 = vld [vmem:[#allocation10 + $0x7c] sm:$0xf]
    %v497 = vld [vmem:[%s6] sm:$0x1]
    %v499 = vperm.slane %v497, 0
    %v533 = vunpack.c.l.b16 %v465
    %v534 = vunpack.c.l.b16 %v466
    %v535 = vunpack.c.l.b16 %v467
    %v536 = vunpack.c.l.b16 %v468
    %v537 = vunpack.c.l.b16 %v469
    %v538 = vunpack.c.l.b16 %v470
    %v539 = vunpack.c.l.b16 %v471
    %v540 = vunpack.c.l.b16 %v472
    %v541 = vunpack.c.l.b16 %v473
    %v542 = vunpack.c.l.b16 %v474
    %v543 = vunpack.c.l.b16 %v475
    %v544 = vunpack.c.l.b16 %v476
    %v545 = vunpack.c.l.b16 %v477
    %v546 = vunpack.c.l.b16 %v478
    %v547 = vunpack.c.l.b16 %v479
    %v548 = vunpack.c.l.b16 %v480
    %v549 = vunpack.c.l.b16 %v481
    %v550 = vunpack.c.l.b16 %v482
    %v551 = vunpack.c.l.b16 %v483
    %v552 = vunpack.c.l.b16 %v484
    %v553 = vunpack.c.l.b16 %v485
    %v554 = vunpack.c.l.b16 %v486
    %v555 = vunpack.c.l.b16 %v487
    %v556 = vunpack.c.l.b16 %v488
    %v557 = vunpack.c.l.b16 %v489
    %v558 = vunpack.c.l.b16 %v490
    %v559 = vunpack.c.l.b16 %v491
    %v560 = vunpack.c.l.b16 %v492
    %v561 = vunpack.c.l.b16 %v493
    %v562 = vunpack.c.l.b16 %v494
    %v563 = vunpack.c.l.b16 %v495
    %v564 = vunpack.c.l.b16 %v496
    %v565 = vpack.c.b16 %v534, %v533
    %v566 = vpack.c.b16 %v536, %v535
    %v567 = vpack.c.b16 %v538, %v537
    %v568 = vpack.c.b16 %v540, %v539
    %v569 = vpack.c.b16 %v542, %v541
    %v570 = vpack.c.b16 %v544, %v543
    %v571 = vpack.c.b16 %v546, %v545
    %v572 = vpack.c.b16 %v548, %v547
    %v573 = vpack.c.b16 %v550, %v549
    %v574 = vpack.c.b16 %v552, %v551
    %v575 = vpack.c.b16 %v554, %v553
    %v576 = vpack.c.b16 %v556, %v555
    %v577 = vpack.c.b16 %v558, %v557
    %v578 = vpack.c.b16 %v560, %v559
    %v579 = vpack.c.b16 %v562, %v561
    %v580 = vpack.c.b16 %v564, %v563
    %597 = vmatpush.bf16.msra.mxu0 %v572
    %598 = vmatpush.bf16.msra.mxu0 %v571
    %599 = vmatpush.bf16.msra.mxu0 %v570
    %600 = vmatpush.bf16.msra.mxu0 %v569
    %601 = vmatpush.bf16.msra.mxu0 %v568
    %602 = vmatpush.bf16.msra.mxu0 %v567
    %603 = vmatpush.bf16.msra.mxu0 %v566
    %604 = vmatpush.bf16.msra.mxu0 %v565
    %605 = vmatmul.bf16.gmra.mxu0 %v463
    %v606 = vpop.f32.mrf.mxu0
    %v607 = vadd.f32 %v499, %v606
    %v608 = vpop.f32.mrf.mxu0
    %609 = vdwg.mxu0
    %610 = vmatpush.bf16.msra.mxu0 %v580
    %611 = vmatpush.bf16.msra.mxu0 %v579
    %612 = vmatpush.bf16.msra.mxu0 %v578
    %613 = vmatpush.bf16.msra.mxu0 %v577
    %614 = vmatpush.bf16.msra.mxu0 %v576
    %615 = vmatpush.bf16.msra.mxu0 %v575
    %616 = vmatpush.bf16.msra.mxu0 %v574
    %617 = vmatpush.bf16.msra.mxu0 %v573
    %618 = vmatmul.bf16.gmra.mxu0 %v464
    %v619 = vpop.f32.mrf.mxu0
    %v620 = vadd.f32 %v607, %v619
    %v621 = vpop.f32.mrf.mxu0
    %622 = vdwg.mxu0
    %v623 = vmax.f32 %v620, 0.0
    %v624 = vpack.c.bf16 %v623, %v623
    %v625 = vld [vmem:[#allocation11] sm:$0xff]
    %v626 = vld [vmem:[#allocation11 + $0x8] sm:$0xff]
    %v627 = vld [vmem:[#allocation11 + $0x10] sm:$0xff]
    %v628 = vld [vmem:[#allocation11 + $0x18] sm:$0xff]
    %v629 = vld [vmem:[#allocation11 + $0x20] sm:$0xff]
    %v630 = vld [vmem:[#allocation11 + $0x28] sm:$0xff]
    %v631 = vld [vmem:[#allocation11 + $0x30] sm:$0xff]
    %v632 = vld [vmem:[#allocation11 + $0x38] sm:$0xff]
    %v633 = vld [vmem:[#allocation11 + $0x40] sm:$0xff]
    %v634 = vld [vmem:[#allocation11 + $0x48] sm:$0xff]
    %v635 = vld [vmem:[#allocation11 + $0x50] sm:$0xff]
    %v636 = vld [vmem:[#allocation11 + $0x58] sm:$0xff]
    %v637 = vld [vmem:[#allocation11 + $0x60] sm:$0xff]
    %v638 = vld [vmem:[#allocation11 + $0x68] sm:$0xff]
    %v639 = vld [vmem:[#allocation11 + $0x70] sm:$0xff]
    %v640 = vld [vmem:[#allocation11 + $0x78] sm:$0xff]
    %v641 = vld [vmem:[%s8] sm:$0x3]
    %v643 = vperm.slane %v641, 0
    %v644 = vperm.slane %v641, 1
    %v663 = vunpack.c.l.b16 %v625
    %v664 = vunpack.c.h.b16 %v625
    %v665 = vunpack.c.l.b16 %v626
    %v666 = vunpack.c.h.b16 %v626
    %v667 = vunpack.c.l.b16 %v627
    %v668 = vunpack.c.h.b16 %v627
    %v669 = vunpack.c.l.b16 %v628
    %v670 = vunpack.c.h.b16 %v628
    %v671 = vunpack.c.l.b16 %v629
    %v672 = vunpack.c.h.b16 %v629
    %v673 = vunpack.c.l.b16 %v630
    %v674 = vunpack.c.h.b16 %v630
    %v675 = vunpack.c.l.b16 %v631
    %v676 = vunpack.c.h.b16 %v631
    %v677 = vunpack.c.l.b16 %v632
    %v678 = vunpack.c.h.b16 %v632
    %v679 = vunpack.c.l.b16 %v633
    %v680 = vunpack.c.h.b16 %v633
    %v681 = vunpack.c.l.b16 %v634
    %v682 = vunpack.c.h.b16 %v634
    %v683 = vunpack.c.l.b16 %v635
    %v684 = vunpack.c.h.b16 %v635
    %v685 = vunpack.c.l.b16 %v636
    %v686 = vunpack.c.h.b16 %v636
    %v687 = vunpack.c.l.b16 %v637
    %v688 = vunpack.c.h.b16 %v637
    %v689 = vunpack.c.l.b16 %v638
    %v690 = vunpack.c.h.b16 %v638
    %v691 = vunpack.c.l.b16 %v639
    %v692 = vunpack.c.h.b16 %v639
    %v693 = vunpack.c.l.b16 %v640
    %v694 = vunpack.c.h.b16 %v640
    %v695 = vpack.c.b16 %v665, %v663
    %v696 = vpack.c.b16 %v666, %v664
    %v697 = vpack.c.b16 %v669, %v667
    %v698 = vpack.c.b16 %v670, %v668
    %v699 = vpack.c.b16 %v673, %v671
    %v700 = vpack.c.b16 %v674, %v672
    %v701 = vpack.c.b16 %v677, %v675
    %v702 = vpack.c.b16 %v678, %v676
    %v703 = vpack.c.b16 %v681, %v679
    %v704 = vpack.c.b16 %v682, %v680
    %v705 = vpack.c.b16 %v685, %v683
    %v706 = vpack.c.b16 %v686, %v684
    %v707 = vpack.c.b16 %v689, %v687
    %v708 = vpack.c.b16 %v690, %v688
    %v709 = vpack.c.b16 %v693, %v691
    %v710 = vpack.c.b16 %v694, %v692
    %727 = vmatpush.bf16.msra.mxu0 %v709
    %728 = vmatpush.bf16.msra.mxu0 %v707
    %729 = vmatpush.bf16.msra.mxu0 %v705
    %730 = vmatpush.bf16.msra.mxu0 %v703
    %731 = vmatpush.bf16.msra.mxu0 %v701
    %732 = vmatpush.bf16.msra.mxu0 %v699
    %733 = vmatpush.bf16.msra.mxu0 %v697
    %734 = vmatpush.bf16.msra.mxu0 %v695
    %735 = vmatmul.bf16.gmra.mxu0 %v624
    %v736 = vpop.f32.mrf.mxu0
    %v737 = vadd.f32 %v643, %v736
    %v738 = vpop.f32.mrf.mxu0
    %739 = vdwg.mxu0
    %740 = vmatpush.bf16.msra.mxu0 %v710
    %741 = vmatpush.bf16.msra.mxu0 %v708
    %742 = vmatpush.bf16.msra.mxu0 %v706
    %743 = vmatpush.bf16.msra.mxu0 %v704
    %744 = vmatpush.bf16.msra.mxu0 %v702
    %745 = vmatpush.bf16.msra.mxu0 %v700
    %746 = vmatpush.bf16.msra.mxu0 %v698
    %747 = vmatpush.bf16.msra.mxu0 %v696
    %748 = vmatmul.bf16.gmra.mxu0 %v624
    %v749 = vpop.f32.mrf.mxu0
    %v750 = vadd.f32 %v644, %v749
    %v751 = vpop.f32.mrf.mxu0
    %752 = vdwg.mxu0
    %v753 = vmax.f32 %v737, 0.0
    %v754 = vmax.f32 %v750, 0.0
    %v755 = vpack.c.bf16 %v753, %v753
    %v756 = vpack.c.bf16 %v754, %v754
    %v757 = vld [vmem:[#allocation13] sm:$0xf]
    %v758 = vld [vmem:[#allocation13 + $0x4] sm:$0xf]
    %v759 = vld [vmem:[#allocation13 + $0x8] sm:$0xf]
    %v760 = vld [vmem:[#allocation13 + $0xc] sm:$0xf]
    %v761 = vld [vmem:[#allocation13 + $0x10] sm:$0xf]
    %v762 = vld [vmem:[#allocation13 + $0x14] sm:$0xf]
    %v763 = vld [vmem:[#allocation13 + $0x18] sm:$0xf]
    %v764 = vld [vmem:[#allocation13 + $0x1c] sm:$0xf]
    %v765 = vld [vmem:[#allocation13 + $0x20] sm:$0xf]
    %v766 = vld [vmem:[#allocation13 + $0x24] sm:$0xf]
    %v767 = vld [vmem:[#allocation13 + $0x28] sm:$0xf]
    %v768 = vld [vmem:[#allocation13 + $0x2c] sm:$0xf]
    %v769 = vld [vmem:[#allocation13 + $0x30] sm:$0xf]
    %v770 = vld [vmem:[#allocation13 + $0x34] sm:$0xf]
    %v771 = vld [vmem:[#allocation13 + $0x38] sm:$0xf]
    %v772 = vld [vmem:[#allocation13 + $0x3c] sm:$0xf]
    %v773 = vld [vmem:[#allocation13 + $0x40] sm:$0xf]
    %v774 = vld [vmem:[#allocation13 + $0x44] sm:$0xf]
    %v775 = vld [vmem:[#allocation13 + $0x48] sm:$0xf]
    %v776 = vld [vmem:[#allocation13 + $0x4c] sm:$0xf]
    %v777 = vld [vmem:[#allocation13 + $0x50] sm:$0xf]
    %v778 = vld [vmem:[#allocation13 + $0x54] sm:$0xf]
    %v779 = vld [vmem:[#allocation13 + $0x58] sm:$0xf]
    %v780 = vld [vmem:[#allocation13 + $0x5c] sm:$0xf]
    %v781 = vld [vmem:[#allocation13 + $0x60] sm:$0xf]
    %v782 = vld [vmem:[#allocation13 + $0x64] sm:$0xf]
    %v783 = vld [vmem:[#allocation13 + $0x68] sm:$0xf]
    %v784 = vld [vmem:[#allocation13 + $0x6c] sm:$0xf]
    %v785 = vld [vmem:[#allocation13 + $0x70] sm:$0xf]
    %v786 = vld [vmem:[#allocation13 + $0x74] sm:$0xf]
    %v787 = vld [vmem:[#allocation13 + $0x78] sm:$0xf]
    %v788 = vld [vmem:[#allocation13 + $0x7c] sm:$0xf]
    %v789 = vld [vmem:[%s10] sm:$0x1]
    %v791 = vperm.slane %v789, 0
    %v825 = vunpack.c.l.b16 %v757
    %v826 = vunpack.c.l.b16 %v758
    %v827 = vunpack.c.l.b16 %v759
    %v828 = vunpack.c.l.b16 %v760
    %v829 = vunpack.c.l.b16 %v761
    %v830 = vunpack.c.l.b16 %v762
    %v831 = vunpack.c.l.b16 %v763
    %v832 = vunpack.c.l.b16 %v764
    %v833 = vunpack.c.l.b16 %v765
    %v834 = vunpack.c.l.b16 %v766
    %v835 = vunpack.c.l.b16 %v767
    %v836 = vunpack.c.l.b16 %v768
    %v837 = vunpack.c.l.b16 %v769
    %v838 = vunpack.c.l.b16 %v770
    %v839 = vunpack.c.l.b16 %v771
    %v840 = vunpack.c.l.b16 %v772
    %v841 = vunpack.c.l.b16 %v773
    %v842 = vunpack.c.l.b16 %v774
    %v843 = vunpack.c.l.b16 %v775
    %v844 = vunpack.c.l.b16 %v776
    %v845 = vunpack.c.l.b16 %v777
    %v846 = vunpack.c.l.b16 %v778
    %v847 = vunpack.c.l.b16 %v779
    %v848 = vunpack.c.l.b16 %v780
    %v849 = vunpack.c.l.b16 %v781
    %v850 = vunpack.c.l.b16 %v782
    %v851 = vunpack.c.l.b16 %v783
    %v852 = vunpack.c.l.b16 %v784
    %v853 = vunpack.c.l.b16 %v785
    %v854 = vunpack.c.l.b16 %v786
    %v855 = vunpack.c.l.b16 %v787
    %v856 = vunpack.c.l.b16 %v788
    %v857 = vpack.c.b16 %v826, %v825
    %v858 = vpack.c.b16 %v828, %v827
    %v859 = vpack.c.b16 %v830, %v829
    %v860 = vpack.c.b16 %v832, %v831
    %v861 = vpack.c.b16 %v834, %v833
    %v862 = vpack.c.b16 %v836, %v835
    %v863 = vpack.c.b16 %v838, %v837
    %v864 = vpack.c.b16 %v840, %v839
    %v865 = vpack.c.b16 %v842, %v841
    %v866 = vpack.c.b16 %v844, %v843
    %v867 = vpack.c.b16 %v846, %v845
    %v868 = vpack.c.b16 %v848, %v847
    %v869 = vpack.c.b16 %v850, %v849
    %v870 = vpack.c.b16 %v852, %v851
    %v871 = vpack.c.b16 %v854, %v853
    %v872 = vpack.c.b16 %v856, %v855
    %889 = vmatpush.bf16.msra.mxu0 %v864
    %890 = vmatpush.bf16.msra.mxu0 %v863
    %891 = vmatpush.bf16.msra.mxu0 %v862
    %892 = vmatpush.bf16.msra.mxu0 %v861
    %893 = vmatpush.bf16.msra.mxu0 %v860
    %894 = vmatpush.bf16.msra.mxu0 %v859
    %895 = vmatpush.bf16.msra.mxu0 %v858
    %896 = vmatpush.bf16.msra.mxu0 %v857
    %897 = vmatmul.bf16.gmra.mxu0 %v755
    %v898 = vpop.f32.mrf.mxu0
    %v899 = vadd.f32 %v791, %v898
    %v900 = vpop.f32.mrf.mxu0
    %901 = vdwg.mxu0
    %902 = vmatpush.bf16.msra.mxu0 %v872
    %903 = vmatpush.bf16.msra.mxu0 %v871
    %904 = vmatpush.bf16.msra.mxu0 %v870
    %905 = vmatpush.bf16.msra.mxu0 %v869
    %906 = vmatpush.bf16.msra.mxu0 %v868
    %907 = vmatpush.bf16.msra.mxu0 %v867
    %908 = vmatpush.bf16.msra.mxu0 %v866
    %909 = vmatpush.bf16.msra.mxu0 %v865
    %910 = vmatmul.bf16.gmra.mxu0 %v756
    %v911 = vpop.f32.mrf.mxu0
    %v912 = vadd.f32 %v899, %v911
    %v913 = vpop.f32.mrf.mxu0
    %914 = vdwg.mxu0
    %v915 = vlaneseq
    %v916 = vand.u32 %v915, 127
    %vm917 = vcmp.eq.s32.totalorder %v916, 2
    %v918 = vmul.f32 %v912, 2.0
    %v919 = vsel %vm917, %v918, %v912
    %v920 = vxor.u32 %v919, 2147483648
    %v921 = vmul.f32 %v920, 1.442695
    %v922 = vpow.pop %v921
    %v923 = vadd.f32 %v922, 1.0
    %v924 = vrcp.pop %v923
    %v925 = vmul.f32 %v923, %v924
    %v926 = vsub.f32 1.0, %v925
    %v927 = vmul.f32 %v924, %v926
    %v928 = vadd.f32 %v924, %v927
    %vm929 = vweird.f32 %v923
    %vm930 = vweird.f32 %v924
    %vm931 = vmor %vm929, %vm930
    %v932 = vsel %vm931, %v924, %v928
    %v933 = vand.u32 2147483647, %v923
    %vm934 = vcmp.eq.f32.partialorder %v933, 8.507059e+37
    %v935 = vand.u32 %v923, 2147483648
    %v936 = vor.u32 1.1754944e-38, %v935
    %v937 = vsel %vm934, %v936, %v932
    %v938 = vmul.f32 1.0, %v937
    %v939 = vmul.f32 %v938, 2.0
    %v940 = vsub.f32 %v939, 1.0
    %v941 = vsel %vm917, %v940, %v938
    %942 = vst [vmem:[#allocation14] sm:$0xff] %v941
    // Predicated region
    $region74: #{tpu_custom_call.1} parent=1 // pred_check
      _
    $region75: #{tpu_custom_call.1} parent=1 // pred_check_branch
      %944 = sbr.rel (0) target = $region77
    $region76: #{tpu_custom_call.1} parent=1 // pred_region
      %946 = vsyncadd [#allocation4], 0
      %s948 = sshll.u32 [#allocation14], 4
      %s949 = int_to_ptr.vmem [resolvable:$true] %s948
      %s950 = sshll.u32 %s11, 4
      %s951 = int_to_ptr.hbm [resolvable:$true] %s950
      %953 = dma.vmem_to_hbm [thread:$0]  %s949, 128, %s951, [#allocation4]
    $region77: #{tpu_custom_call.1} parent=1 // pred_fallthru
      _
    // Predicated region
    $region78: #{tpu_custom_call.1} parent=1 // pred_check
      _
    $region79: #{tpu_custom_call.1} parent=1 // pred_check_branch
      %955 = sbr.rel (0) target = $region81
    $region80: #{tpu_custom_call.1} parent=1 // pred_region
      %957 = dma.done [#allocation4], 128
    $region81: #{tpu_custom_call.1} parent=1 // pred_fallthru
      _
    %958 = vsyncpa [#allocation3], 1
    %959 = vsyncpa [#allocation6], 1
    %960 = vsyncpa [#allocation9], 1
    %961 = vsyncpa [#allocation12], 1
    %962 = vsyncpa [#allocation4], 1

</llo_original>
